<compile_context>
chip_gen: v5e
topology: v5e:2x2
jax: 0.10.0
libtpu: 0.0.40
codegen_flags: <defaults>
</compile_context>

<pallas_src>
import jax
import jax.numpy as jnp
from jax.experimental import pallas as pl
from jax.experimental.pallas import tpu as pltpu

LANE = 128


def _conv1x1_kernel(x_ref, w_ref, b_ref, o_ref):
    # x_ref: (1, Cin, R, 128) VMEM tile; o_ref: (1, Cout, R, 128) VMEM tile.
    # w_ref: (Cout, Cin) f32 in SMEM; b_ref: (Cout,) f32 in SMEM.
    cin = x_ref.shape[1]
    cout = o_ref.shape[1]
    for co in range(cout):                       # tiny; fully unrolled at trace time
        acc = x_ref[0, 0].astype(jnp.float32) * w_ref[co, 0]
        for ci in range(1, cin):
            acc = acc + x_ref[0, ci].astype(jnp.float32) * w_ref[co, ci]
        o_ref[0, co] = (acc + b_ref[co]).astype(o_ref.dtype)


def final_convolution(x, weight, bias, *, tile_rows_max=1024):
    """1x1 Conv2d. x: (N, Cin, H, W); weight: (Cout, Cin, 1, 1); bias: (Cout,).

    tile_rows_max=1024 -> 128K lanes per step (~3 MiB in + ~1.5 MiB out @ f32,
    Cin=4/Cout=2): >90% of HBM roofline on v5e/v6e, comfortably inside the
    default scoped-VMEM budget on every generation (v5e 16 MiB, v6e 32 MiB,
    v7x 32/64 MiB) with double buffering.
    """
    N, Cin, H, W = x.shape
    Cout = weight.shape[0]
    S = H * W

    rows = (S + LANE - 1) // LANE               # pad spatial only to a 128 multiple
    s128 = rows * LANE

    x3 = x.reshape(N, Cin, S)                   # free reshape: NCHW is contiguous
    if s128 != S:
        x3 = jnp.pad(x3, ((0, 0), (0, 0), (0, s128 - S)))   # <=127 lanes of pad
    x4 = x3.reshape(N, Cin, rows, LANE)         # free reshape

    # Tile rows: full dim if it fits, else a multiple of 8 (ragged last block
    # handled by grid=cdiv + Pallas boundary masking; safe for elementwise).
    if rows <= tile_rows_max:
        tile_rows = rows
    else:
        tile_rows = tile_rows_max
    grid_s = pl.cdiv(rows, tile_rows)

    # v7x: make sure the parallel grid has >= 2 steps so both TensorCores work.
    if N * grid_s < 2 and rows >= 16:
        tile_rows = max(8, ((rows + 15) // 16) * 8)   # ~half, multiple of 8
        grid_s = pl.cdiv(rows, tile_rows)

    w_mat = weight.reshape(Cout, Cin).astype(jnp.float32)
    b_vec = bias.reshape(Cout).astype(jnp.float32)

    out4 = pl.pallas_call(
        _conv1x1_kernel,
        out_shape=jax.ShapeDtypeStruct((N, Cout, rows, LANE), x.dtype),
        grid_spec=pltpu.PrefetchScalarGridSpec(
            num_scalar_prefetch=0,
            grid=(N, grid_s),
            in_specs=[
                pl.BlockSpec((1, Cin, tile_rows, LANE), lambda n, s: (n, 0, s, 0)),
                pl.BlockSpec(memory_space=pltpu.MemorySpace.SMEM),   # weights
                pl.BlockSpec(memory_space=pltpu.MemorySpace.SMEM),   # bias
            ],
            out_specs=pl.BlockSpec((1, Cout, tile_rows, LANE),
                                   lambda n, s: (n, 0, s, 0)),
        ),
        compiler_params=pltpu.CompilerParams(
            dimension_semantics=("parallel", "parallel")),
    )(x4, w_mat, b_vec)

    out3 = out4.reshape(N, Cout, s128)
    if s128 != S:
        out3 = out3[:, :, :S]                   # only when S % 128 != 0
    return out3.reshape(N, Cout, H, W)


if __name__ == "__main__":
    key = jax.random.PRNGKey(0)
    k_x, k_w, k_b = jax.random.split(key, 3)

    N, Cin, Cout, Hs, Ws = 2, 4, 2, 16, 16

    x = jax.random.normal(k_x, (N, Cin, Hs, Ws), dtype=jnp.float32)
    # nn.Conv2d(in_channels=4, out_channels=2, kernel_size=1) parameter shapes.
    weight = jax.random.normal(k_w, (Cout, Cin, 1, 1), dtype=jnp.float32) * 0.1
    bias = jax.random.normal(k_b, (Cout,), dtype=jnp.float32) * 0.1

    out = final_convolution(x, weight, bias)
    jax.block_until_ready(out)

    # Pure-JAX reference (1x1 conv == einsum over the channel axis) + bias.
    # TODO(synk): module constructs nn.Sigmoid() but forward() never applies it;
    # kernel intentionally matches forward() (conv-only).
    ref = (jnp.einsum("nchw,oc->nohw", x, weight.reshape(Cout, Cin))
           + bias[None, :, None, None])
    assert out.shape == (N, Cout, Hs, Ws)
    assert jnp.allclose(out, ref, atol=1e-5, rtol=1e-5)

    print("KERNEL_OK")
</pallas_src>

<mosaic_0001>
module attributes {stable_mosaic.version = 11 : i64} {
  func.func @_conv1x1_kernel(%arg0: i32, %arg1: i32, %arg2: memref<1x4x2x128xf32, #tpu.memory_space<vmem>>, %arg3: memref<2x4xf32, #tpu.memory_space<smem>>, %arg4: memref<2xf32, #tpu.memory_space<smem>>, %arg5: memref<1x2x2x128xf32, #tpu.memory_space<vmem>>) attributes {dimension_semantics = [#tpu.dimension_semantics<parallel>, #tpu.dimension_semantics<parallel>], iteration_bounds = array<i64: 2, 1>, scalar_prefetch = 0 : i64, scratch_operands = 0 : i64, tpu.core_type = #tpu.core_type<tc>, window_params = [{transform_indices = @transform_0, window_bounds = array<i64: 1, 4, 2, 128>}, {transform_indices = @transform_1, window_bounds = array<i64: 2, 4>}, {transform_indices = @transform_2, window_bounds = array<i64: 2>}, {transform_indices = @transform_3, window_bounds = array<i64: 1, 2, 2, 128>}]} {
    %c0 = arith.constant 0 : index
    %c0_0 = arith.constant 0 : index
    %c0_1 = arith.constant 0 : index
    %c0_2 = arith.constant 0 : index
    %0 = vector.load %arg2[%c0, %c0_0, %c0_1, %c0_2] : memref<1x4x2x128xf32, #tpu.memory_space<vmem>>, vector<1x1x2x128xf32>
    %1 = vector.shape_cast %0 : vector<1x1x2x128xf32> to vector<2x128xf32>
    %c0_3 = arith.constant 0 : index
    %c0_4 = arith.constant 0 : index
    %2 = memref.load %arg3[%c0_3, %c0_4] : memref<2x4xf32, #tpu.memory_space<smem>>
    %3 = vector.broadcast %2 : f32 to vector<2x128xf32>
    %4 = arith.mulf %1, %3 : vector<2x128xf32>
    %c0_5 = arith.constant 0 : index
    %c1 = arith.constant 1 : index
    %c0_6 = arith.constant 0 : index
    %c0_7 = arith.constant 0 : index
    %5 = vector.load %arg2[%c0_5, %c1, %c0_6, %c0_7] : memref<1x4x2x128xf32, #tpu.memory_space<vmem>>, vector<1x1x2x128xf32>
    %6 = vector.shape_cast %5 : vector<1x1x2x128xf32> to vector<2x128xf32>
    %c0_8 = arith.constant 0 : index
    %c1_9 = arith.constant 1 : index
    %7 = memref.load %arg3[%c0_8, %c1_9] : memref<2x4xf32, #tpu.memory_space<smem>>
    %8 = vector.broadcast %7 : f32 to vector<2x128xf32>
    %9 = arith.mulf %6, %8 : vector<2x128xf32>
    %10 = arith.addf %4, %9 : vector<2x128xf32>
    %c0_10 = arith.constant 0 : index
    %c2 = arith.constant 2 : index
    %c0_11 = arith.constant 0 : index
    %c0_12 = arith.constant 0 : index
    %11 = vector.load %arg2[%c0_10, %c2, %c0_11, %c0_12] : memref<1x4x2x128xf32, #tpu.memory_space<vmem>>, vector<1x1x2x128xf32>
    %12 = vector.shape_cast %11 : vector<1x1x2x128xf32> to vector<2x128xf32>
    %c0_13 = arith.constant 0 : index
    %c2_14 = arith.constant 2 : index
    %13 = memref.load %arg3[%c0_13, %c2_14] : memref<2x4xf32, #tpu.memory_space<smem>>
    %14 = vector.broadcast %13 : f32 to vector<2x128xf32>
    %15 = arith.mulf %12, %14 : vector<2x128xf32>
    %16 = arith.addf %10, %15 : vector<2x128xf32>
    %c0_15 = arith.constant 0 : index
    %c3 = arith.constant 3 : index
    %c0_16 = arith.constant 0 : index
    %c0_17 = arith.constant 0 : index
    %17 = vector.load %arg2[%c0_15, %c3, %c0_16, %c0_17] : memref<1x4x2x128xf32, #tpu.memory_space<vmem>>, vector<1x1x2x128xf32>
    %18 = vector.shape_cast %17 : vector<1x1x2x128xf32> to vector<2x128xf32>
    %c0_18 = arith.constant 0 : index
    %c3_19 = arith.constant 3 : index
    %19 = memref.load %arg3[%c0_18, %c3_19] : memref<2x4xf32, #tpu.memory_space<smem>>
    %20 = vector.broadcast %19 : f32 to vector<2x128xf32>
    %21 = arith.mulf %18, %20 : vector<2x128xf32>
    %22 = arith.addf %16, %21 : vector<2x128xf32>
    %c0_20 = arith.constant 0 : index
    %23 = memref.load %arg4[%c0_20] : memref<2xf32, #tpu.memory_space<smem>>
    %24 = vector.broadcast %23 : f32 to vector<2x128xf32>
    %25 = arith.addf %22, %24 : vector<2x128xf32>
    %c0_21 = arith.constant 0 : index
    %c0_22 = arith.constant 0 : index
    %c0_23 = arith.constant 0 : index
    %c0_24 = arith.constant 0 : index
    %26 = vector.load %arg5[%c0_21, %c0_22, %c0_23, %c0_24] : memref<1x2x2x128xf32, #tpu.memory_space<vmem>>, vector<1x1x2x128xf32>
    %27 = vector.shape_cast %26 : vector<1x1x2x128xf32> to vector<2x128xf32>
    %28 = vector.shape_cast %25 : vector<2x128xf32> to vector<1x1x2x128xf32>
    tpu.vector_store %arg5[%c0_21, %c0_22, %c0_23, %c0_24], %28 {strides = array<i32>} : memref<1x2x2x128xf32, #tpu.memory_space<vmem>>, vector<1x1x2x128xf32>,
    %c0_25 = arith.constant 0 : index
    %c0_26 = arith.constant 0 : index
    %c0_27 = arith.constant 0 : index
    %c0_28 = arith.constant 0 : index
    %29 = vector.load %arg2[%c0_25, %c0_26, %c0_27, %c0_28] : memref<1x4x2x128xf32, #tpu.memory_space<vmem>>, vector<1x1x2x128xf32>
    %30 = vector.shape_cast %29 : vector<1x1x2x128xf32> to vector<2x128xf32>
    %c1_29 = arith.constant 1 : index
    %c0_30 = arith.constant 0 : index
    %31 = memref.load %arg3[%c1_29, %c0_30] : memref<2x4xf32, #tpu.memory_space<smem>>
    %32 = vector.broadcast %31 : f32 to vector<2x128xf32>
    %33 = arith.mulf %30, %32 : vector<2x128xf32>
    %c0_31 = arith.constant 0 : index
    %c1_32 = arith.constant 1 : index
    %c0_33 = arith.constant 0 : index
    %c0_34 = arith.constant 0 : index
    %34 = vector.load %arg2[%c0_31, %c1_32, %c0_33, %c0_34] : memref<1x4x2x128xf32, #tpu.memory_space<vmem>>, vector<1x1x2x128xf32>
    %35 = vector.shape_cast %34 : vector<1x1x2x128xf32> to vector<2x128xf32>
    %c1_35 = arith.constant 1 : index
    %c1_36 = arith.constant 1 : index
    %36 = memref.load %arg3[%c1_35, %c1_36] : memref<2x4xf32, #tpu.memory_space<smem>>
    %37 = vector.broadcast %36 : f32 to vector<2x128xf32>
    %38 = arith.mulf %35, %37 : vector<2x128xf32>
    %39 = arith.addf %33, %38 : vector<2x128xf32>
    %c0_37 = arith.constant 0 : index
    %c2_38 = arith.constant 2 : index
    %c0_39 = arith.constant 0 : index
    %c0_40 = arith.constant 0 : index
    %40 = vector.load %arg2[%c0_37, %c2_38, %c0_39, %c0_40] : memref<1x4x2x128xf32, #tpu.memory_space<vmem>>, vector<1x1x2x128xf32>
    %41 = vector.shape_cast %40 : vector<1x1x2x128xf32> to vector<2x128xf32>
    %c1_41 = arith.constant 1 : index
    %c2_42 = arith.constant 2 : index
    %42 = memref.load %arg3[%c1_41, %c2_42] : memref<2x4xf32, #tpu.memory_space<smem>>
    %43 = vector.broadcast %42 : f32 to vector<2x128xf32>
    %44 = arith.mulf %41, %43 : vector<2x128xf32>
    %45 = arith.addf %39, %44 : vector<2x128xf32>
    %c0_43 = arith.constant 0 : index
    %c3_44 = arith.constant 3 : index
    %c0_45 = arith.constant 0 : index
    %c0_46 = arith.constant 0 : index
    %46 = vector.load %arg2[%c0_43, %c3_44, %c0_45, %c0_46] : memref<1x4x2x128xf32, #tpu.memory_space<vmem>>, vector<1x1x2x128xf32>
    %47 = vector.shape_cast %46 : vector<1x1x2x128xf32> to vector<2x128xf32>
    %c1_47 = arith.constant 1 : index
    %c3_48 = arith.constant 3 : index
    %48 = memref.load %arg3[%c1_47, %c3_48] : memref<2x4xf32, #tpu.memory_space<smem>>
    %49 = vector.broadcast %48 : f32 to vector<2x128xf32>
    %50 = arith.mulf %47, %49 : vector<2x128xf32>
    %51 = arith.addf %45, %50 : vector<2x128xf32>
    %c1_49 = arith.constant 1 : index
    %52 = memref.load %arg4[%c1_49] : memref<2xf32, #tpu.memory_space<smem>>
    %53 = vector.broadcast %52 : f32 to vector<2x128xf32>
    %54 = arith.addf %51, %53 : vector<2x128xf32>
    %c0_50 = arith.constant 0 : index
    %c1_51 = arith.constant 1 : index
    %c0_52 = arith.constant 0 : index
    %c0_53 = arith.constant 0 : index
    %55 = vector.load %arg5[%c0_50, %c1_51, %c0_52, %c0_53] : memref<1x2x2x128xf32, #tpu.memory_space<vmem>>, vector<1x1x2x128xf32>
    %56 = vector.shape_cast %55 : vector<1x1x2x128xf32> to vector<2x128xf32>
    %57 = vector.shape_cast %54 : vector<2x128xf32> to vector<1x1x2x128xf32>
    tpu.vector_store %arg5[%c0_50, %c1_51, %c0_52, %c0_53], %57 {strides = array<i32>} : memref<1x2x2x128xf32, #tpu.memory_space<vmem>>, vector<1x1x2x128xf32>,
    return
  }
  func.func @transform_0(%arg0: i32, %arg1: i32) -> (i32, i32, i32, i32) {
    %c0_i32 = arith.constant 0 : i32
    %c0_i32_0 = arith.constant 0 : i32
    %c0_i32_1 = arith.constant 0 : i32
    return %arg0, %c0_i32, %arg1, %c0_i32_0 : i32, i32, i32, i32
  }
  func.func @transform_1(%arg0: i32, %arg1: i32) -> (i32, i32) {
    %c0_i32 = arith.constant 0 : i32
    %c0_i32_0 = arith.constant 0 : i32
    %c0_i32_1 = arith.constant 0 : i32
    return %c0_i32, %c0_i32_0 : i32, i32
  }
  func.func @transform_2(%arg0: i32, %arg1: i32) -> i32 {
    %c0_i32 = arith.constant 0 : i32
    %c0_i32_0 = arith.constant 0 : i32
    return %c0_i32 : i32
  }
  func.func @transform_3(%arg0: i32, %arg1: i32) -> (i32, i32, i32, i32) {
    %c0_i32 = arith.constant 0 : i32
    %c0_i32_0 = arith.constant 0 : i32
    %c0_i32_1 = arith.constant 0 : i32
    return %arg0, %c0_i32, %arg1, %c0_i32_0 : i32, i32, i32, i32
  }
}

</mosaic_0001>

<llo_original>
// kernel: tpu_custom_call.1
$region0: #{tpu_custom_call.1}
  #allocation0 [shape = 'u32[]', space=smem, size = 0x4, offset = 0x4, fixed_abs, tag = 'smem constant byte address 0x4 - core index']
  #allocation1 [shape = 'u32[72,128]{1,0:T(1,128)}', space=vmem, size = 0x9000, scoped, tag = 'internal scratch']
  %s0 = inlined_call_operand.hbm [shape: f32[2,4,2,128], index: 0, kind: input, shape index: {}]
  %s1 = inlined_call_operand.hbm [shape: f32[2,4], index: 1, kind: input, shape index: {}]
  %s2 = inlined_call_operand.vmem [shape: f32[2], index: 2, kind: input, shape index: {}]
  %s3 = inlined_call_operand.hbm [shape: f32[2,2,2,128], index: 3, kind: output, shape index: {}]
  %s4 = sld [smem:[#allocation0]]
  $region57: #{tpu_custom_call.1} parent=0
    _
  %s6 = ssub.s32 1, %s4
  %s7 = scalar_select 0, %s6, %s4
  $region1: #{tpu_custom_call.1} parent=0
    #allocation2 [shape = 'u8[8192]{0}', space=vmem, size = 0x2000, scoped, tag = 'input window, operand 0']
    #allocation3 [shape = 's32[2]{0}', space=sflag, size = 0x8, scoped, tag = 'scoped memory for tpu_custom_call.1']
    #allocation4 [shape = 's32[2]{0}', space=sflag, size = 0x8, scoped, tag = 'scoped memory for tpu_custom_call.1']
    #allocation5 [shape = 's32[2]{0}', space=sflag, size = 0x8, scoped, tag = 'scoped memory for tpu_custom_call.1']
    #allocation6 [shape = 's32[2]{0}', space=sflag, size = 0x8, scoped, tag = 'scoped memory for tpu_custom_call.1']
    #allocation7 [shape = 'u8[1024]{0}', space=smem, size = 0x400, scoped, tag = 'input window, operand 1, single buffered']
    #allocation8 [shape = 'u8[512]{0}', space=smem, size = 0x200, scoped, tag = 'input window, operand 2, single buffered']
    #allocation9 [shape = 'u8[4096]{0}', space=vmem, size = 0x1000, scoped, tag = 'output window, operand 0']
    %8 = vsyncpa [#allocation3], 0
    %s9 = scalar_lea.sflag [#allocation3], 1
    %10 = vsyncpa %s9, 0
    %11 = vsyncpa [#allocation5], 0
    %12 = vsyncpa [#allocation6], 0
    %13 = vsyncpa [#allocation4], 0
    %s14 = scalar_lea.sflag [#allocation4], 1
    %15 = vsyncpa %s14, 0
    loop: start=0, step=1, limit=4
    $region2: #{tpu_custom_call.1} parent=1 // loop_pre_header
      _
    $region3: #{tpu_custom_call.1} parent=1 // loop_header
      %s17 = sphi 0, %s21
      %p18 = scmp.ge.s32.totalorder %s17, 4
      %s24 = sphi 0, %s36
      %s25 = sphi 0, %s32
      %s26 = sphi 0, %s24
      %s27 = sphi 0, %s25
      %s28 = sphi 0, %s26
      %s29 = sphi 0, %s27
      %s41 = sphi 0, %s43
      %s44 = sphi 0, %s41
      %s45 = sphi 0, %s44
      %s61 = sphi 0, %s45
      %s65 = sphi 0, %s65
      %s67 = sphi 0, %s65
      %s68 = sphi 0, %s67
      %s82 = sphi 0, %s68
      %s86 = sphi 0, %s86
      %s88 = sphi 0, %s86
      %s89 = sphi 0, %s88
      %s103 = sphi 0, %s89
      %s111 = sphi 0, %s113
      %s114 = sphi 0, %s111
      %s115 = sphi 0, %s114
      %s131 = sphi 0, %s115
    $region4: #{tpu_custom_call.1} parent=1 // loop_header_branch
      %20 = sbr.rel (%p18) target = $region8
    $region5: #{tpu_custom_call.1} parent=1 // loop_body
      %s22 = ssub.s32 %s17, 1
      %s23 = ssub.s32 %s17, 2
      %s30 = sadd.s32 1, %s25
      %p31 = scmp.ge.s32.totalorder %s30, 1
      %s32 = scalar_select %p31, 0, %s30
      %s33 = sadd.s32 1, %s24
      %s34 = scalar_select %p31, %s33, %s24
      %p35 = scmp.ge.s32.totalorder %s34, 2
      %s36 = scalar_select %p35, 0, %s34
      %s37 = ssub.s32 %s24, %s36
      %s38 = ssub.s32 %s25, %s32
      %s39 = sor.u32 %s37, %s38
      %p40 = scmp.eq.s32.totalorder %s39, 0
      %s42 = sadd.s32 %s41, 1
      %s43 = scalar_select %p40, %s41, %s42
      %p46 = pneg %p40
      %p47 = scmp.eq.s32.totalorder %s17, 1
      %p48 = por %p46, %p47
      %p49 = scmp.ne.s32.totalorder %s41, %s44
      %p50 = scmp.eq.s32.totalorder %s17, 0
      %p51 = por %p49, %p50
      %p52 = scmp.ne.s32.totalorder %s41, %s44
      %p53 = scmp.eq.s32.totalorder %s22, 1
      %p54 = por %p52, %p53
      %p55 = scmp.ne.s32.totalorder %s44, %s45
      %p56 = scmp.eq.s32.totalorder %s22, 0
      %p57 = por %p55, %p56
      %p58 = scmp.ne.s32.totalorder %s44, %s45
      %p59 = scmp.eq.s32.totalorder %s23, 1
      %p60 = por %p58, %p59
      %p62 = scmp.ne.s32.totalorder %s45, %s61
      %p63 = scmp.eq.s32.totalorder %s23, 0
      %p64 = por %p62, %p63
      %s66 = sadd.s32 %s65, 1
      %p69 = scmp.eq.s32.totalorder %s17, 1
      %p70 = scmp.ne.s32.totalorder %s65, %s67
      %p71 = scmp.eq.s32.totalorder %s17, 0
      %p72 = por %p70, %p71
      %p73 = scmp.ne.s32.totalorder %s65, %s67
      %p74 = scmp.eq.s32.totalorder %s22, 1
      %p75 = por %p73, %p74
      %p76 = scmp.ne.s32.totalorder %s67, %s68
      %p77 = scmp.eq.s32.totalorder %s22, 0
      %p78 = por %p76, %p77
      %p79 = scmp.ne.s32.totalorder %s67, %s68
      %p80 = scmp.eq.s32.totalorder %s23, 1
      %p81 = por %p79, %p80
      %p83 = scmp.ne.s32.totalorder %s68, %s82
      %p84 = scmp.eq.s32.totalorder %s23, 0
      %p85 = por %p83, %p84
      %s87 = sadd.s32 %s86, 1
      %p90 = scmp.eq.s32.totalorder %s17, 1
      %p91 = scmp.ne.s32.totalorder %s86, %s88
      %p92 = scmp.eq.s32.totalorder %s17, 0
      %p93 = por %p91, %p92
      %p94 = scmp.ne.s32.totalorder %s86, %s88
      %p95 = scmp.eq.s32.totalorder %s22, 1
      %p96 = por %p94, %p95
      %p97 = scmp.ne.s32.totalorder %s88, %s89
      %p98 = scmp.eq.s32.totalorder %s22, 0
      %p99 = por %p97, %p98
      %p100 = scmp.ne.s32.totalorder %s88, %s89
      %p101 = scmp.eq.s32.totalorder %s23, 1
      %p102 = por %p100, %p101
      %p104 = scmp.ne.s32.totalorder %s89, %s103
      %p105 = scmp.eq.s32.totalorder %s23, 0
      %p106 = por %p104, %p105
      %s107 = ssub.s32 %s24, %s36
      %s108 = ssub.s32 %s25, %s32
      %s109 = sor.u32 %s107, %s108
      %p110 = scmp.eq.s32.totalorder %s109, 0
      %s112 = sadd.s32 %s111, 1
      %s113 = scalar_select %p110, %s111, %s112
      %p116 = pneg %p110
      %p117 = scmp.eq.s32.totalorder %s17, 1
      %p118 = por %p116, %p117
      %p119 = scmp.ne.s32.totalorder %s111, %s114
      %p120 = scmp.eq.s32.totalorder %s17, 0
      %p121 = por %p119, %p120
      %p122 = scmp.ne.s32.totalorder %s111, %s114
      %p123 = scmp.eq.s32.totalorder %s22, 1
      %p124 = por %p122, %p123
      %p125 = scmp.ne.s32.totalorder %s114, %s115
      %p126 = scmp.eq.s32.totalorder %s22, 0
      %p127 = por %p125, %p126
      %p128 = scmp.ne.s32.totalorder %s114, %s115
      %p129 = scmp.eq.s32.totalorder %s23, 1
      %p130 = por %p128, %p129
      %p132 = scmp.ne.s32.totalorder %s115, %s131
      %p133 = scmp.eq.s32.totalorder %s23, 0
      %p134 = por %p132, %p133
      %p135 = scmp.le.s32.totalorder 1, %s17
      %p136 = scmp.lt.s32.totalorder %s17, 3
      %p137 = pnand %p135, %p136
      %p138 = pneg %p137
      // Predicated region
      $region9: #{tpu_custom_call.1} parent=5 // pred_check
        _
      $region10: #{tpu_custom_call.1} parent=5 // pred_check_branch
        %140 = sbr.rel (%p137) target = $region12
      $region11: #{tpu_custom_call.1} parent=5 // pred_region
        %s141 = ssub.s32 %s17, 1
        // Predicated region
        $region13: #{tpu_custom_call.1} parent=11 // pred_check
          %p142 = pneg %p78
        $region14: #{tpu_custom_call.1} parent=11 // pred_check_branch
          %144 = sbr.rel (%p142) target = $region16
        $region15: #{tpu_custom_call.1} parent=11 // pred_region
          %146 = vsyncadd [#allocation5], 0
          %s148 = sshll.u32 %s1, 4
          %s149 = int_to_ptr.hbm [resolvable:$true] %s148
          %151 = dma.hbm_to_smem %s149, 32, [#allocation7], [#allocation5]
        $region16: #{tpu_custom_call.1} parent=11 // pred_fallthru
          _
        // Predicated region
        $region17: #{tpu_custom_call.1} parent=11 // pred_check
          %p152 = pneg %p99
        $region18: #{tpu_custom_call.1} parent=11 // pred_check_branch
          %154 = sbr.rel (%p152) target = $region20
        $region19: #{tpu_custom_call.1} parent=11 // pred_region
          %156 = vsyncadd [#allocation6], 0
          %s158 = sshll.u32 %s2, 4
          %s159 = int_to_ptr.vmem [resolvable:$true] %s158
          %161 = dma.vmem_to_smem %s159, 16, [#allocation8], [#allocation6]
        $region20: #{tpu_custom_call.1} parent=11 // pred_fallthru
          _
      $region12: #{tpu_custom_call.1} parent=5 // pred_fallthru
        _
      %p162 = scmp.lt.s32.totalorder %s17, 2
      // Predicated region
      $region21: #{tpu_custom_call.1} parent=5 // pred_check
        %p163 = pneg %p162
      $region22: #{tpu_custom_call.1} parent=5 // pred_check_branch
        %165 = sbr.rel (%p163) target = $region24
      $region23: #{tpu_custom_call.1} parent=5 // pred_region
        // Predicated region
        $region25: #{tpu_custom_call.1} parent=23 // pred_check
          %p166 = pneg %p51
        $region26: #{tpu_custom_call.1} parent=23 // pred_check_branch
          %168 = sbr.rel (%p166) target = $region28
        $region27: #{tpu_custom_call.1} parent=23 // pred_region
          %s169 = sand.u32 %s41, 1
          %s170 = scalar_lea.sflag [#allocation3], %s169
          %s171 = sand.u32 %s41, 1
          %s172 = smul.addr %s171, 8
          %s173 = scalar_lea.vmem [#allocation2], %s172
          %175 = vsyncadd %s170, 0
          %s176 = smul.addr %s24, 4
          %s177 = sadd.s32 %s25, %s176
          %s178 = smul.addr %s177, 2
          %s179 = scalar_lea.hbm %s0, %s178
          %s180 = sshll.u32 %s179, 4
          %s181 = int_to_ptr.hbm [resolvable:$true] %s180
          %s182 = sshll.u32 %s173, 4
          %s183 = int_to_ptr.vmem [resolvable:$true] %s182
          %188 = dma.hbm_to_vmem [thread:$0]  %s181, 128, %s183, %s170, 32, 32, 2
        $region28: #{tpu_custom_call.1} parent=23 // pred_fallthru
          _
      $region24: #{tpu_custom_call.1} parent=5 // pred_fallthru
        _
      %p189 = scmp.le.s32.totalorder 1, %s17
      %p190 = scmp.lt.s32.totalorder %s17, 3
      %p191 = pnand %p189, %p190
      %p192 = pneg %p191
      // Predicated region
      $region29: #{tpu_custom_call.1} parent=5 // pred_check
        _
      $region30: #{tpu_custom_call.1} parent=5 // pred_check_branch
        %194 = sbr.rel (%p191) target = $region32
      $region31: #{tpu_custom_call.1} parent=5 // pred_region
        %s195 = ssub.s32 %s17, 1
        %s196 = sand.u32 %s44, 1
        %s197 = scalar_lea.sflag [#allocation3], %s196
        %s198 = sand.u32 %s44, 1
        %s199 = smul.addr %s198, 8
        %s200 = scalar_lea.vmem [#allocation2], %s199
        // Predicated region
        $region33: #{tpu_custom_call.1} parent=31 // pred_check
          %p201 = pneg %p57
        $region34: #{tpu_custom_call.1} parent=31 // pred_check_branch
          %203 = sbr.rel (%p201) target = $region36
        $region35: #{tpu_custom_call.1} parent=31 // pred_region
          %205 = dma.done %s197, 128
        $region36: #{tpu_custom_call.1} parent=31 // pred_fallthru
          _
        // Predicated region
        $region37: #{tpu_custom_call.1} parent=31 // pred_check
          %p206 = pneg %p78
        $region38: #{tpu_custom_call.1} parent=31 // pred_check_branch
          %208 = sbr.rel (%p206) target = $region40
        $region39: #{tpu_custom_call.1} parent=31 // pred_region
          %210 = dma.done [#allocation5], 32
        $region40: #{tpu_custom_call.1} parent=31 // pred_fallthru
          _
        // Predicated region
        $region41: #{tpu_custom_call.1} parent=31 // pred_check
          %p211 = pneg %p99
        $region42: #{tpu_custom_call.1} parent=31 // pred_check_branch
          %213 = sbr.rel (%p211) target = $region44
        $region43: #{tpu_custom_call.1} parent=31 // pred_region
          %215 = dma.done [#allocation6], 16
        $region44: #{tpu_custom_call.1} parent=31 // pred_fallthru
          _
        %216 = sfence
        %s217 = sand.u32 %s44, 1
        %s218 = scalar_lea.sflag [#allocation3], %s217
        %s219 = sand.u32 %s44, 1
        %s220 = smul.addr %s219, 8
        %s221 = scalar_lea.vmem [#allocation2], %s220
        %p222 = pneg %p57
        %p223 = pneg %p54
        %p224 = pneg %p78
        %p225 = pneg %p75
        %p226 = pneg %p99
        %p227 = pneg %p96
        %p228 = pneg %p127
        %p229 = pneg %p124
        %s230 = sand.u32 %s114, 1
        %s231 = scalar_lea.sflag [#allocation4], %s230
        %s232 = sand.u32 %s114, 1
        %s233 = smul.addr %s232, 4
        %s234 = scalar_lea.vmem [#allocation9], %s233
        %v235 = vld [vmem:[%s200] sm:$0x3]
        %s236 = sld [smem:[#allocation7]]
        %v237 = vstv %s236
        %v238 = vmul.f32 %v235, %v237
        %s239 = scalar_lea.vmem %s200, 2 [#allocation2]
        %v240 = vld [vmem:[%s239] sm:$0x3]
        %s241 = sld [smem:[#allocation7 + $0x1]]
        %v242 = vstv %s241
        %v243 = vmul.f32 %v240, %v242
        %v244 = vadd.f32 %v238, %v243
        %s245 = scalar_lea.vmem %s200, 4 [#allocation2]
        %v246 = vld [vmem:[%s245] sm:$0x3]
        %s247 = sld [smem:[#allocation7 + $0x2]]
        %v248 = vstv %s247
        %v249 = vmul.f32 %v246, %v248
        %v250 = vadd.f32 %v244, %v249
        %s251 = scalar_lea.vmem %s200, 6 [#allocation2]
        %v252 = vld [vmem:[%s251] sm:$0x3]
        %s253 = sld [smem:[#allocation7 + $0x3]]
        %v254 = vstv %s253
        %v255 = vmul.f32 %v252, %v254
        %v256 = vadd.f32 %v250, %v255
        %s257 = sld [smem:[#allocation8]]
        %v258 = vstv %s257
        %v259 = vadd.f32 %v256, %v258
        %260 = vst [vmem:[%s234] sm:$0x3] %v259
        %v261 = vld [vmem:[%s200] sm:$0x3]
        %s262 = sld [smem:[#allocation7 + $0x80]]
        %v263 = vstv %s262
        %v264 = vmul.f32 %v261, %v263
        %v265 = vld [vmem:[%s239] sm:$0x3]
        %s266 = sld [smem:[#allocation7 + $0x81]]
        %v267 = vstv %s266
        %v268 = vmul.f32 %v265, %v267
        %v269 = vadd.f32 %v264, %v268
        %v270 = vld [vmem:[%s245] sm:$0x3]
        %s271 = sld [smem:[#allocation7 + $0x82]]
        %v272 = vstv %s271
        %v273 = vmul.f32 %v270, %v272
        %v274 = vadd.f32 %v269, %v273
        %v275 = vld [vmem:[%s251] sm:$0x3]
        %s276 = sld [smem:[#allocation7 + $0x83]]
        %v277 = vstv %s276
        %v278 = vmul.f32 %v275, %v277
        %v279 = vadd.f32 %v274, %v278
        %s280 = sld [smem:[#allocation8 + $0x1]]
        %v281 = vstv %s280
        %v282 = vadd.f32 %v279, %v281
        %s283 = scalar_lea.vmem %s234, 2 [#allocation9]
        %284 = vst [vmem:[%s283] sm:$0x3] %v282
        %s285 = sand.u32 %s114, 1
        %s286 = scalar_lea.sflag [#allocation4], %s285
        %s287 = sand.u32 %s114, 1
        %s288 = smul.addr %s287, 4
        %s289 = scalar_lea.vmem [#allocation9], %s288
        // Predicated region
        $region45: #{tpu_custom_call.1} parent=31 // pred_check
          %p290 = pneg %p124
        $region46: #{tpu_custom_call.1} parent=31 // pred_check_branch
          %292 = sbr.rel (%p290) target = $region48
        $region47: #{tpu_custom_call.1} parent=31 // pred_region
          %294 = vsyncadd %s286, 0
          %s295 = smul.addr %s26, 2
          %s296 = sadd.s32 %s27, %s295
          %s297 = smul.addr %s296, 2
          %s298 = scalar_lea.hbm %s3, %s297
          %s299 = sshll.u32 %s289, 4
          %s300 = int_to_ptr.vmem [resolvable:$true] %s299
          %s301 = sshll.u32 %s298, 4
          %s302 = int_to_ptr.hbm [resolvable:$true] %s301
          %307 = dma.vmem_to_hbm [thread:$0]  %s300, 64, %s302, %s286, 32, 32, 2
        $region48: #{tpu_custom_call.1} parent=31 // pred_fallthru
          _
      $region32: #{tpu_custom_call.1} parent=5 // pred_fallthru
        _
      %p308 = scmp.le.s32.totalorder 2, %s17
      // Predicated region
      $region49: #{tpu_custom_call.1} parent=5 // pred_check
        %p309 = pneg %p308
      $region50: #{tpu_custom_call.1} parent=5 // pred_check_branch
        %311 = sbr.rel (%p309) target = $region52
      $region51: #{tpu_custom_call.1} parent=5 // pred_region
        %s312 = ssub.s32 %s17, 2
        // Predicated region
        $region53: #{tpu_custom_call.1} parent=51 // pred_check
          %p313 = pneg %p130
        $region54: #{tpu_custom_call.1} parent=51 // pred_check_branch
          %315 = sbr.rel (%p313) target = $region56
        $region55: #{tpu_custom_call.1} parent=51 // pred_region
          %s316 = sand.u32 %s115, 1
          %s317 = scalar_lea.sflag [#allocation4], %s316
          %s318 = sand.u32 %s115, 1
          %s319 = smul.addr %s318, 4
          %s320 = scalar_lea.vmem [#allocation9], %s319
          %322 = dma.done %s317, 64
        $region56: #{tpu_custom_call.1} parent=51 // pred_fallthru
          _
      $region52: #{tpu_custom_call.1} parent=5 // pred_fallthru
        _
    $region6: #{tpu_custom_call.1} parent=1 // loop_footer
      %s21 = sadd.s32 1, %s17
    $region7: #{tpu_custom_call.1} parent=1 // loop_footer_branch
      %16 = sbr.rel target = $region3
    $region8: #{tpu_custom_call.1} parent=1 // loop_exit
      _
    %323 = vsyncpa [#allocation3], 1
    %s324 = scalar_lea.sflag [#allocation3], 1
    %325 = vsyncpa %s324, 1
    %326 = vsyncpa [#allocation4], 1
    %s327 = scalar_lea.sflag [#allocation4], 1
    %328 = vsyncpa %s327, 1
    %329 = vsyncpa [#allocation5], 1
    %s330 = scalar_lea.sflag [#allocation5], 1
    %331 = vsyncpa %s330, 1
    %332 = vsyncpa [#allocation6], 1
    %s333 = scalar_lea.sflag [#allocation6], 1
    %334 = vsyncpa %s333, 1

</llo_original>
